<compile_context>
chip_gen: v7x
topology: tpu7x:2x2x1
jax: 0.10.0
libtpu: 0.0.40
codegen_flags: <defaults>
</compile_context>

<pallas_src>
import jax
import jax.numpy as jnp
from jax.experimental import pallas as pl
from jax.experimental.pallas import tpu as pltpu


def mlp_kernel(x_ref, w1_ref, b1_ref, w2_ref, b2_ref, w3_ref, b3_ref, o_ref):
    # Fused 3-layer MLP on one batch tile, fully resident in VMEM.
    # Matmuls feed the MXU (bf16 inputs, f32 accumulation); bias add + ReLU on the VPU in f32.
    cd = w1_ref.dtype
    x = x_ref[...]
    h1 = jnp.dot(x, w1_ref[...], preferred_element_type=jnp.float32) + b1_ref[...]
    h1 = jnp.maximum(h1, 0.0).astype(cd)
    h2 = jnp.dot(h1, w2_ref[...], preferred_element_type=jnp.float32) + b2_ref[...]
    h2 = jnp.maximum(h2, 0.0).astype(cd)
    out = jnp.dot(h2, w3_ref[...], preferred_element_type=jnp.float32) + b3_ref[...]
    o_ref[...] = out.astype(o_ref.dtype)


def _round_up(v, m):
    return (v + m - 1) // m * m


def _pick_tile_b(B, max_tile=1024):
    """Largest multiple-of-8 divisor of B that is <= max_tile and yields >= 2 grid
    steps (pipelining + megacore); falls back to the full batch (always legal)."""
    if B % 8 != 0:
        return B
    best = None
    t = 8
    while t <= min(B, max_tile):
        if B % t == 0 and B // t >= 2:
            best = t
        t += 8
    return best if best is not None else B


def neural_network_forward(x, params, *, tile_b=None, compute_dtype=jnp.bfloat16):
    """Runs the fused MLP kernel. x: (B, input_size) float32. Returns (B, num_classes) f32."""
    w1, b1, w2, b2, w3, b3 = params
    B, D_in = x.shape
    H1 = w1.shape[1]   # 128
    H2 = w2.shape[1]   # 64
    C = w3.shape[1]    # num_classes

    # --- lane-dense classifier: zero-pad num_classes up to a multiple of 128 ---
    C_pad = _round_up(C, 128)
    if C_pad != C:
        w3 = jnp.pad(w3, ((0, 0), (0, C_pad - C)))
        b3 = jnp.pad(b3, ((0, 0), (0, C_pad - C)))

    # --- bf16 activations/weights (halve HBM bytes, native MXU), f32 biases/accum ---
    x_c = x.astype(compute_dtype)
    w1_c, w2_c, w3_c = (w.astype(compute_dtype) for w in (w1, w2, w3))
    b1_c, b2_c, b3_c = (b.astype(jnp.float32) for b in (b1, b2, b3))

    # --- batch tiling: multiple grid steps, tile_b multiple of 8 (or full batch) ---
    if tile_b is None:
        tile_b = _pick_tile_b(B)
    assert B % tile_b == 0, "batch must be divisible by tile_b"
    assert tile_b == B or tile_b % 8 == 0, \
        "tile_b must be a multiple of 8 (or equal the full batch)"
    grid = (B // tile_b,)

    # Weights/biases are tiny and grid-invariant: replicate full tensors every step.
    # (Kept default-buffered for lowering robustness; VMEM cost is ~100 KB total.)
    full = lambda shape: pl.BlockSpec(shape, lambda i: tuple(0 for _ in shape))

    out_padded = pl.pallas_call(
        mlp_kernel,
        out_shape=jax.ShapeDtypeStruct((B, C_pad), jnp.float32),
        grid_spec=pltpu.PrefetchScalarGridSpec(
            num_scalar_prefetch=0,
            grid=grid,
            in_specs=[
                pl.BlockSpec((tile_b, D_in), lambda i: (i, 0)),  # x tile
                full((D_in, H1)),                                # W1
                full((1, H1)),                                   # b1 (f32)
                full((H1, H2)),                                  # W2
                full((1, H2)),                                   # b2 (f32)
                full((H2, C_pad)),                               # W3 (lane-padded)
                full((1, C_pad)),                                # b3 (lane-padded, f32)
            ],
            out_specs=pl.BlockSpec((tile_b, C_pad), lambda i: (i, 0)),
        ),
        compiler_params=pltpu.CompilerParams(
            dimension_semantics=("parallel",),      # batch axis shards across TCs (v7x)
            vmem_limit_bytes=32 * 1024 * 1024,      # plenty of headroom, safe on all gens
        ),
    )(x_c, w1_c, b1_c, w2_c, b2_c, w3_c, b3_c)

    return out_padded[:, :C]


def init_params(key, input_size, num_classes):
    """Deterministic init matching PyTorch nn.Linear default (U[-1/sqrt(fan_in), 1/sqrt(fan_in)]).
    Weights are stored already transposed: (in_features, out_features)."""
    dims = [(input_size, 128), (128, 64), (64, num_classes)]
    params = []
    for (fan_in, fan_out) in dims:
        key, kw, kb = jax.random.split(key, 3)
        bound = 1.0 / (fan_in ** 0.5)
        w = jax.random.uniform(kw, (fan_in, fan_out), jnp.float32, -bound, bound)
        b = jax.random.uniform(kb, (1, fan_out), jnp.float32, -bound, bound)
        params += [w, b]
    return tuple(params)


def reference_forward_f32(x, params):
    w1, b1, w2, b2, w3, b3 = params
    h1 = jnp.maximum(x @ w1 + b1, 0.0)
    h2 = jnp.maximum(h1 @ w2 + b2, 0.0)
    return h2 @ w3 + b3


def reference_forward_matched(x, params, compute_dtype=jnp.bfloat16):
    """Reference performing the same bf16-input / f32-accumulate math as the kernel."""
    w1, b1, w2, b2, w3, b3 = params
    cd = compute_dtype
    h1 = jnp.dot(x.astype(cd), w1.astype(cd), preferred_element_type=jnp.float32) + b1
    h1 = jnp.maximum(h1, 0.0)
    h2 = jnp.dot(h1.astype(cd), w2.astype(cd), preferred_element_type=jnp.float32) + b2
    h2 = jnp.maximum(h2, 0.0)
    return jnp.dot(h2.astype(cd), w3.astype(cd), preferred_element_type=jnp.float32) + b3


if __name__ == "__main__":
    key = jax.random.PRNGKey(0)
    batch, input_size, num_classes = 64, 32, 10   # small shapes; tile_b auto -> 32, grid=(2,)

    key, kx = jax.random.split(key)
    x = jax.random.normal(kx, (batch, input_size), jnp.float32)
    params = init_params(key, input_size, num_classes)

    out = neural_network_forward(x, params)
    out = jax.block_until_ready(out)
    assert out.shape == (batch, num_classes)

    # Exact-path check (same bf16/f32 math as the kernel).
    ref_matched = reference_forward_matched(x, params)
    assert jnp.allclose(out, ref_matched, atol=1e-3, rtol=1e-3), "mismatch vs matched bf16 reference"

    # Semantics check vs the pure-f32 PyTorch-equivalent forward (bf16 quantization tolerance).
    ref_f32 = reference_forward_f32(x, params)
    assert jnp.allclose(out, ref_f32, atol=5e-2, rtol=5e-2), "mismatch vs f32 reference"

    print("KERNEL_OK")
</pallas_src>

<mosaic_0001>
module attributes {stable_mosaic.version = 11 : i64} {
  func.func @mlp_kernel(%arg0: i32, %arg1: memref<32x32xbf16, #tpu.memory_space<vmem>>, %arg2: memref<32x128xbf16, #tpu.memory_space<vmem>>, %arg3: memref<1x128xf32, #tpu.memory_space<vmem>>, %arg4: memref<128x64xbf16, #tpu.memory_space<vmem>>, %arg5: memref<1x64xf32, #tpu.memory_space<vmem>>, %arg6: memref<64x128xbf16, #tpu.memory_space<vmem>>, %arg7: memref<1x128xf32, #tpu.memory_space<vmem>>, %arg8: memref<32x128xf32, #tpu.memory_space<vmem>>) attributes {dimension_semantics = [#tpu.dimension_semantics<parallel>], iteration_bounds = array<i64: 2>, scalar_prefetch = 0 : i64, scratch_operands = 0 : i64, tpu.core_type = #tpu.core_type<tc>, window_params = [{transform_indices = @transform_0, window_bounds = array<i64: 32, 32>}, {pipeline_mode = #tpu.pipeline_mode<synchronous>, transform_indices = @transform_1, window_bounds = array<i64: 32, 128>}, {pipeline_mode = #tpu.pipeline_mode<synchronous>, transform_indices = @transform_2, window_bounds = array<i64: 1, 128>}, {pipeline_mode = #tpu.pipeline_mode<synchronous>, transform_indices = @transform_3, window_bounds = array<i64: 128, 64>}, {pipeline_mode = #tpu.pipeline_mode<synchronous>, transform_indices = @transform_4, window_bounds = array<i64: 1, 64>}, {pipeline_mode = #tpu.pipeline_mode<synchronous>, transform_indices = @transform_5, window_bounds = array<i64: 64, 128>}, {pipeline_mode = #tpu.pipeline_mode<synchronous>, transform_indices = @transform_6, window_bounds = array<i64: 1, 128>}, {transform_indices = @transform_7, window_bounds = array<i64: 32, 128>}]} {
    %c0 = arith.constant 0 : index
    %c0_0 = arith.constant 0 : index
    %0 = vector.load %arg1[%c0, %c0_0] : memref<32x32xbf16, #tpu.memory_space<vmem>>, vector<32x32xbf16>
    %c0_1 = arith.constant 0 : index
    %c0_2 = arith.constant 0 : index
    %1 = vector.load %arg2[%c0_1, %c0_2] : memref<32x128xbf16, #tpu.memory_space<vmem>>, vector<32x128xbf16>
    %cst = arith.constant dense<0.000000e+00> : vector<32x128xf32>
    %2 = tpu.matmul %0, %1, %cst {dimension_numbers = #tpu.dot_dimension_numbers<[1], [0], [0], [1], [0, 0, 1, 1], [], []>} : vector<32x32xbf16>, vector<32x128xbf16>, vector<32x128xf32> -> vector<32x128xf32>
    %c0_3 = arith.constant 0 : index
    %c0_4 = arith.constant 0 : index
    %3 = vector.load %arg3[%c0_3, %c0_4] : memref<1x128xf32, #tpu.memory_space<vmem>>, vector<1x128xf32>
    %4 = vector.broadcast %3 : vector<1x128xf32> to vector<32x128xf32>
    %5 = arith.addf %2, %4 : vector<32x128xf32>
    %cst_5 = arith.constant 0.000000e+00 : f32
    %6 = vector.broadcast %cst_5 : f32 to vector<32x128xf32>
    %7 = arith.maximumf %5, %6 : vector<32x128xf32>
    %8 = arith.truncf %7 : vector<32x128xf32> to vector<32x128xbf16>
    %c0_6 = arith.constant 0 : index
    %c0_7 = arith.constant 0 : index
    %9 = vector.load %arg4[%c0_6, %c0_7] : memref<128x64xbf16, #tpu.memory_space<vmem>>, vector<128x64xbf16>
    %cst_8 = arith.constant dense<0.000000e+00> : vector<32x64xf32>
    %10 = tpu.matmul %8, %9, %cst_8 {dimension_numbers = #tpu.dot_dimension_numbers<[1], [0], [0], [1], [0, 0, 1, 1], [], []>} : vector<32x128xbf16>, vector<128x64xbf16>, vector<32x64xf32> -> vector<32x64xf32>
    %c0_9 = arith.constant 0 : index
    %c0_10 = arith.constant 0 : index
    %11 = vector.load %arg5[%c0_9, %c0_10] : memref<1x64xf32, #tpu.memory_space<vmem>>, vector<1x64xf32>
    %12 = vector.broadcast %11 : vector<1x64xf32> to vector<32x64xf32>
    %13 = arith.addf %10, %12 : vector<32x64xf32>
    %cst_11 = arith.constant 0.000000e+00 : f32
    %14 = vector.broadcast %cst_11 : f32 to vector<32x64xf32>
    %15 = arith.maximumf %13, %14 : vector<32x64xf32>
    %16 = arith.truncf %15 : vector<32x64xf32> to vector<32x64xbf16>
    %c0_12 = arith.constant 0 : index
    %c0_13 = arith.constant 0 : index
    %17 = vector.load %arg6[%c0_12, %c0_13] : memref<64x128xbf16, #tpu.memory_space<vmem>>, vector<64x128xbf16>
    %cst_14 = arith.constant dense<0.000000e+00> : vector<32x128xf32>
    %18 = tpu.matmul %16, %17, %cst_14 {dimension_numbers = #tpu.dot_dimension_numbers<[1], [0], [0], [1], [0, 0, 1, 1], [], []>} : vector<32x64xbf16>, vector<64x128xbf16>, vector<32x128xf32> -> vector<32x128xf32>
    %c0_15 = arith.constant 0 : index
    %c0_16 = arith.constant 0 : index
    %19 = vector.load %arg7[%c0_15, %c0_16] : memref<1x128xf32, #tpu.memory_space<vmem>>, vector<1x128xf32>
    %20 = vector.broadcast %19 : vector<1x128xf32> to vector<32x128xf32>
    %21 = arith.addf %18, %20 : vector<32x128xf32>
    %c0_17 = arith.constant 0 : index
    %c0_18 = arith.constant 0 : index
    %22 = vector.load %arg8[%c0_17, %c0_18] : memref<32x128xf32, #tpu.memory_space<vmem>>, vector<32x128xf32>
    tpu.vector_store %arg8[%c0_17, %c0_18], %21 {strides = array<i32>} : memref<32x128xf32, #tpu.memory_space<vmem>>, vector<32x128xf32>,
    return
  }
  func.func @transform_0(%arg0: i32) -> (i32, i32) {
    %c0_i32 = arith.constant 0 : i32
    %c0_i32_0 = arith.constant 0 : i32
    return %arg0, %c0_i32 : i32, i32
  }
  func.func @transform_1(%arg0: i32) -> (i32, i32) {
    %c0_i32 = arith.constant 0 : i32
    %c0_i32_0 = arith.constant 0 : i32
    %c0_i32_1 = arith.constant 0 : i32
    return %c0_i32, %c0_i32_0 : i32, i32
  }
  func.func @transform_2(%arg0: i32) -> (i32, i32) {
    %c0_i32 = arith.constant 0 : i32
    %c0_i32_0 = arith.constant 0 : i32
    %c0_i32_1 = arith.constant 0 : i32
    return %c0_i32, %c0_i32_0 : i32, i32
  }
  func.func @transform_3(%arg0: i32) -> (i32, i32) {
    %c0_i32 = arith.constant 0 : i32
    %c0_i32_0 = arith.constant 0 : i32
    %c0_i32_1 = arith.constant 0 : i32
    return %c0_i32, %c0_i32_0 : i32, i32
  }
  func.func @transform_4(%arg0: i32) -> (i32, i32) {
    %c0_i32 = arith.constant 0 : i32
    %c0_i32_0 = arith.constant 0 : i32
    %c0_i32_1 = arith.constant 0 : i32
    return %c0_i32, %c0_i32_0 : i32, i32
  }
  func.func @transform_5(%arg0: i32) -> (i32, i32) {
    %c0_i32 = arith.constant 0 : i32
    %c0_i32_0 = arith.constant 0 : i32
    %c0_i32_1 = arith.constant 0 : i32
    return %c0_i32, %c0_i32_0 : i32, i32
  }
  func.func @transform_6(%arg0: i32) -> (i32, i32) {
    %c0_i32 = arith.constant 0 : i32
    %c0_i32_0 = arith.constant 0 : i32
    %c0_i32_1 = arith.constant 0 : i32
    return %c0_i32, %c0_i32_0 : i32, i32
  }
  func.func @transform_7(%arg0: i32) -> (i32, i32) {
    %c0_i32 = arith.constant 0 : i32
    %c0_i32_0 = arith.constant 0 : i32
    return %arg0, %c0_i32 : i32, i32
  }
}

</mosaic_0001>

<llo_original>
// kernel: tpu_custom_call.1
$region0: #{tpu_custom_call.1}
  #allocation0 [shape = 'u32[]', space=smem, size = 0x4, offset = 0x4, fixed_abs, tag = 'smem constant byte address 0x4 - core index']
  #allocation1 [shape = 'u32[144,128]{1,0:T(1,128)}', space=vmem, size = 0x12000, scoped, tag = 'internal scratch']
  %s0 = inlined_call_operand.vmem [shape: bf16[64,32], index: 0, kind: input, shape index: {}]
  %s1 = inlined_call_operand.vmem [shape: bf16[32,128], index: 1, kind: input, shape index: {}]
  %s2 = inlined_call_operand.vmem [shape: f32[1,128], index: 2, kind: input, shape index: {}]
  %s3 = inlined_call_operand.vmem [shape: bf16[128,64], index: 3, kind: input, shape index: {}]
  %s4 = inlined_call_operand.vmem [shape: f32[1,64], index: 4, kind: input, shape index: {}]
  %s5 = inlined_call_operand.vmem [shape: bf16[64,128], index: 5, kind: input, shape index: {}]
  %s6 = inlined_call_operand.vmem [shape: f32[1,128], index: 6, kind: input, shape index: {}]
  %s7 = inlined_call_operand.hbm [shape: f32[64,128], index: 7, kind: output, shape index: {}]
  %s8 = sld [smem:[#allocation0]]
  $region61: #{tpu_custom_call.1} parent=0
    _
  %s10 = ssub.s32 1, %s8
  %s11 = scalar_select 0, %s10, %s8
  $region1: #{tpu_custom_call.1} parent=0
    #allocation2 [shape = 'u8[32768]{0}', space=vmem, size = 0x8000, scoped, tag = 'output window, operand 0']
    #allocation3 [shape = 's32[2]{0}', space=sflag, size = 0x8, scoped, tag = 'scoped memory for tpu_custom_call.1']
    %12 = vsyncpa [#allocation3], 0
    %s13 = scalar_lea.sflag [#allocation3], 1
    %14 = vsyncpa %s13, 0
    loop: start=0, step=1, limit=4
    $region2: #{tpu_custom_call.1} parent=1 // loop_pre_header
      _
    $region3: #{tpu_custom_call.1} parent=1 // loop_header
      %s16 = sphi 0, %s20
      %p17 = scmp.ge.s32.totalorder %s16, 4
      %s26 = sphi 0, %s28
      %s29 = sphi 0, %s26
      %s30 = sphi 0, %s29
      %s46 = sphi 0, %s30
      %s50 = sphi 0, %s50
      %s52 = sphi 0, %s50
      %s53 = sphi 0, %s52
      %s67 = sphi 0, %s53
      %s71 = sphi 0, %s71
      %s73 = sphi 0, %s71
      %s74 = sphi 0, %s73
      %s88 = sphi 0, %s74
      %s92 = sphi 0, %s92
      %s94 = sphi 0, %s92
      %s95 = sphi 0, %s94
      %s109 = sphi 0, %s95
      %s113 = sphi 0, %s113
      %s115 = sphi 0, %s113
      %s116 = sphi 0, %s115
      %s130 = sphi 0, %s116
      %s134 = sphi 0, %s134
      %s136 = sphi 0, %s134
      %s137 = sphi 0, %s136
      %s151 = sphi 0, %s137
      %s155 = sphi 0, %s155
      %s157 = sphi 0, %s155
      %s158 = sphi 0, %s157
      %s172 = sphi 0, %s158
      %s178 = sphi 0, %s180
      %s181 = sphi 0, %s178
      %s182 = sphi 0, %s181
      %s198 = sphi 0, %s182
    $region4: #{tpu_custom_call.1} parent=1 // loop_header_branch
      %19 = sbr.rel (%p17) target = $region8
    $region5: #{tpu_custom_call.1} parent=1 // loop_body
      %s21 = ssub.s32 %s16, 1
      %s22 = ssub.s32 %s16, 2
      %s23 = sadd.s32 %s16, 1
      %s24 = ssub.s32 %s16, %s23
      %p25 = scmp.eq.s32.totalorder %s24, 0
      %s27 = sadd.s32 %s26, 1
      %s28 = scalar_select %p25, %s26, %s27
      %p31 = pneg %p25
      %p32 = scmp.eq.s32.totalorder %s16, 1
      %p33 = por %p31, %p32
      %p34 = scmp.ne.s32.totalorder %s26, %s29
      %p35 = scmp.eq.s32.totalorder %s16, 0
      %p36 = por %p34, %p35
      %p37 = scmp.ne.s32.totalorder %s26, %s29
      %p38 = scmp.eq.s32.totalorder %s21, 1
      %p39 = por %p37, %p38
      %p40 = scmp.ne.s32.totalorder %s29, %s30
      %p41 = scmp.eq.s32.totalorder %s21, 0
      %p42 = por %p40, %p41
      %p43 = scmp.ne.s32.totalorder %s29, %s30
      %p44 = scmp.eq.s32.totalorder %s22, 1
      %p45 = por %p43, %p44
      %p47 = scmp.ne.s32.totalorder %s30, %s46
      %p48 = scmp.eq.s32.totalorder %s22, 0
      %p49 = por %p47, %p48
      %s51 = sadd.s32 %s50, 1
      %p54 = scmp.eq.s32.totalorder %s16, 1
      %p55 = scmp.ne.s32.totalorder %s50, %s52
      %p56 = scmp.eq.s32.totalorder %s16, 0
      %p57 = por %p55, %p56
      %p58 = scmp.ne.s32.totalorder %s50, %s52
      %p59 = scmp.eq.s32.totalorder %s21, 1
      %p60 = por %p58, %p59
      %p61 = scmp.ne.s32.totalorder %s52, %s53
      %p62 = scmp.eq.s32.totalorder %s21, 0
      %p63 = por %p61, %p62
      %p64 = scmp.ne.s32.totalorder %s52, %s53
      %p65 = scmp.eq.s32.totalorder %s22, 1
      %p66 = por %p64, %p65
      %p68 = scmp.ne.s32.totalorder %s53, %s67
      %p69 = scmp.eq.s32.totalorder %s22, 0
      %p70 = por %p68, %p69
      %s72 = sadd.s32 %s71, 1
      %p75 = scmp.eq.s32.totalorder %s16, 1
      %p76 = scmp.ne.s32.totalorder %s71, %s73
      %p77 = scmp.eq.s32.totalorder %s16, 0
      %p78 = por %p76, %p77
      %p79 = scmp.ne.s32.totalorder %s71, %s73
      %p80 = scmp.eq.s32.totalorder %s21, 1
      %p81 = por %p79, %p80
      %p82 = scmp.ne.s32.totalorder %s73, %s74
      %p83 = scmp.eq.s32.totalorder %s21, 0
      %p84 = por %p82, %p83
      %p85 = scmp.ne.s32.totalorder %s73, %s74
      %p86 = scmp.eq.s32.totalorder %s22, 1
      %p87 = por %p85, %p86
      %p89 = scmp.ne.s32.totalorder %s74, %s88
      %p90 = scmp.eq.s32.totalorder %s22, 0
      %p91 = por %p89, %p90
      %s93 = sadd.s32 %s92, 1
      %p96 = scmp.eq.s32.totalorder %s16, 1
      %p97 = scmp.ne.s32.totalorder %s92, %s94
      %p98 = scmp.eq.s32.totalorder %s16, 0
      %p99 = por %p97, %p98
      %p100 = scmp.ne.s32.totalorder %s92, %s94
      %p101 = scmp.eq.s32.totalorder %s21, 1
      %p102 = por %p100, %p101
      %p103 = scmp.ne.s32.totalorder %s94, %s95
      %p104 = scmp.eq.s32.totalorder %s21, 0
      %p105 = por %p103, %p104
      %p106 = scmp.ne.s32.totalorder %s94, %s95
      %p107 = scmp.eq.s32.totalorder %s22, 1
      %p108 = por %p106, %p107
      %p110 = scmp.ne.s32.totalorder %s95, %s109
      %p111 = scmp.eq.s32.totalorder %s22, 0
      %p112 = por %p110, %p111
      %s114 = sadd.s32 %s113, 1
      %p117 = scmp.eq.s32.totalorder %s16, 1
      %p118 = scmp.ne.s32.totalorder %s113, %s115
      %p119 = scmp.eq.s32.totalorder %s16, 0
      %p120 = por %p118, %p119
      %p121 = scmp.ne.s32.totalorder %s113, %s115
      %p122 = scmp.eq.s32.totalorder %s21, 1
      %p123 = por %p121, %p122
      %p124 = scmp.ne.s32.totalorder %s115, %s116
      %p125 = scmp.eq.s32.totalorder %s21, 0
      %p126 = por %p124, %p125
      %p127 = scmp.ne.s32.totalorder %s115, %s116
      %p128 = scmp.eq.s32.totalorder %s22, 1
      %p129 = por %p127, %p128
      %p131 = scmp.ne.s32.totalorder %s116, %s130
      %p132 = scmp.eq.s32.totalorder %s22, 0
      %p133 = por %p131, %p132
      %s135 = sadd.s32 %s134, 1
      %p138 = scmp.eq.s32.totalorder %s16, 1
      %p139 = scmp.ne.s32.totalorder %s134, %s136
      %p140 = scmp.eq.s32.totalorder %s16, 0
      %p141 = por %p139, %p140
      %p142 = scmp.ne.s32.totalorder %s134, %s136
      %p143 = scmp.eq.s32.totalorder %s21, 1
      %p144 = por %p142, %p143
      %p145 = scmp.ne.s32.totalorder %s136, %s137
      %p146 = scmp.eq.s32.totalorder %s21, 0
      %p147 = por %p145, %p146
      %p148 = scmp.ne.s32.totalorder %s136, %s137
      %p149 = scmp.eq.s32.totalorder %s22, 1
      %p150 = por %p148, %p149
      %p152 = scmp.ne.s32.totalorder %s137, %s151
      %p153 = scmp.eq.s32.totalorder %s22, 0
      %p154 = por %p152, %p153
      %s156 = sadd.s32 %s155, 1
      %p159 = scmp.eq.s32.totalorder %s16, 1
      %p160 = scmp.ne.s32.totalorder %s155, %s157
      %p161 = scmp.eq.s32.totalorder %s16, 0
      %p162 = por %p160, %p161
      %p163 = scmp.ne.s32.totalorder %s155, %s157
      %p164 = scmp.eq.s32.totalorder %s21, 1
      %p165 = por %p163, %p164
      %p166 = scmp.ne.s32.totalorder %s157, %s158
      %p167 = scmp.eq.s32.totalorder %s21, 0
      %p168 = por %p166, %p167
      %p169 = scmp.ne.s32.totalorder %s157, %s158
      %p170 = scmp.eq.s32.totalorder %s22, 1
      %p171 = por %p169, %p170
      %p173 = scmp.ne.s32.totalorder %s158, %s172
      %p174 = scmp.eq.s32.totalorder %s22, 0
      %p175 = por %p173, %p174
      %s176 = ssub.s32 %s16, %s23
      %p177 = scmp.eq.s32.totalorder %s176, 0
      %s179 = sadd.s32 %s178, 1
      %s180 = scalar_select %p177, %s178, %s179
      %p183 = pneg %p177
      %p184 = scmp.eq.s32.totalorder %s16, 1
      %p185 = por %p183, %p184
      %p186 = scmp.ne.s32.totalorder %s178, %s181
      %p187 = scmp.eq.s32.totalorder %s16, 0
      %p188 = por %p186, %p187
      %p189 = scmp.ne.s32.totalorder %s178, %s181
      %p190 = scmp.eq.s32.totalorder %s21, 1
      %p191 = por %p189, %p190
      %p192 = scmp.ne.s32.totalorder %s181, %s182
      %p193 = scmp.eq.s32.totalorder %s21, 0
      %p194 = por %p192, %p193
      %p195 = scmp.ne.s32.totalorder %s181, %s182
      %p196 = scmp.eq.s32.totalorder %s22, 1
      %p197 = por %p195, %p196
      %p199 = scmp.ne.s32.totalorder %s182, %s198
      %p200 = scmp.eq.s32.totalorder %s22, 0
      %p201 = por %p199, %p200
      %p202 = scmp.le.s32.totalorder 1, %s16
      %p203 = scmp.lt.s32.totalorder %s16, 3
      %p204 = pnand %p202, %p203
      %p205 = pneg %p204
      // Predicated region
      $region9: #{tpu_custom_call.1} parent=5 // pred_check
        _
      $region10: #{tpu_custom_call.1} parent=5 // pred_check_branch
        %207 = sbr.rel (%p204) target = $region12
      $region11: #{tpu_custom_call.1} parent=5 // pred_region
        %s208 = ssub.s32 %s16, 1
        // Predicated region
        $region13: #{tpu_custom_call.1} parent=11 // pred_check
          %p209 = pneg %p63
        $region14: #{tpu_custom_call.1} parent=11 // pred_check_branch
          %211 = sbr.rel (%p209) target = $region16
        $region15: #{tpu_custom_call.1} parent=11 // pred_region
          _
        $region16: #{tpu_custom_call.1} parent=11 // pred_fallthru
          _
        // Predicated region
        $region17: #{tpu_custom_call.1} parent=11 // pred_check
          %p212 = pneg %p84
        $region18: #{tpu_custom_call.1} parent=11 // pred_check_branch
          %214 = sbr.rel (%p212) target = $region20
        $region19: #{tpu_custom_call.1} parent=11 // pred_region
          _
        $region20: #{tpu_custom_call.1} parent=11 // pred_fallthru
          _
        // Predicated region
        $region21: #{tpu_custom_call.1} parent=11 // pred_check
          %p215 = pneg %p105
        $region22: #{tpu_custom_call.1} parent=11 // pred_check_branch
          %217 = sbr.rel (%p215) target = $region24
        $region23: #{tpu_custom_call.1} parent=11 // pred_region
          _
        $region24: #{tpu_custom_call.1} parent=11 // pred_fallthru
          _
        // Predicated region
        $region25: #{tpu_custom_call.1} parent=11 // pred_check
          %p218 = pneg %p126
        $region26: #{tpu_custom_call.1} parent=11 // pred_check_branch
          %220 = sbr.rel (%p218) target = $region28
        $region27: #{tpu_custom_call.1} parent=11 // pred_region
          _
        $region28: #{tpu_custom_call.1} parent=11 // pred_fallthru
          _
        // Predicated region
        $region29: #{tpu_custom_call.1} parent=11 // pred_check
          %p221 = pneg %p147
        $region30: #{tpu_custom_call.1} parent=11 // pred_check_branch
          %223 = sbr.rel (%p221) target = $region32
        $region31: #{tpu_custom_call.1} parent=11 // pred_region
          _
        $region32: #{tpu_custom_call.1} parent=11 // pred_fallthru
          _
        // Predicated region
        $region33: #{tpu_custom_call.1} parent=11 // pred_check
          %p224 = pneg %p168
        $region34: #{tpu_custom_call.1} parent=11 // pred_check_branch
          %226 = sbr.rel (%p224) target = $region36
        $region35: #{tpu_custom_call.1} parent=11 // pred_region
          _
        $region36: #{tpu_custom_call.1} parent=11 // pred_fallthru
          _
      $region12: #{tpu_custom_call.1} parent=5 // pred_fallthru
        _
      %p227 = scmp.lt.s32.totalorder %s16, 2
      // Predicated region
      $region37: #{tpu_custom_call.1} parent=5 // pred_check
        %p228 = pneg %p227
      $region38: #{tpu_custom_call.1} parent=5 // pred_check_branch
        %230 = sbr.rel (%p228) target = $region40
      $region39: #{tpu_custom_call.1} parent=5 // pred_region
        // Predicated region
        $region41: #{tpu_custom_call.1} parent=39 // pred_check
          %p231 = pneg %p36
        $region42: #{tpu_custom_call.1} parent=39 // pred_check_branch
          %233 = sbr.rel (%p231) target = $region44
        $region43: #{tpu_custom_call.1} parent=39 // pred_region
          %s234 = smul.u32 4, %s16
          %p235 = scmp.lt.s32.totalorder %s234, 7
          %s236 = scalar_select %p235, %s234, 7
          %s237 = smul.addr %s236, 4
          %s238 = scalar_lea.vmem %s0, %s237
          %s239 = smul.u32 4, %s16
        $region44: #{tpu_custom_call.1} parent=39 // pred_fallthru
          _
      $region40: #{tpu_custom_call.1} parent=5 // pred_fallthru
        _
      %p240 = scmp.le.s32.totalorder 1, %s16
      %p241 = scmp.lt.s32.totalorder %s16, 3
      %p242 = pnand %p240, %p241
      %p243 = pneg %p242
      // Predicated region
      $region45: #{tpu_custom_call.1} parent=5 // pred_check
        _
      $region46: #{tpu_custom_call.1} parent=5 // pred_check_branch
        %245 = sbr.rel (%p242) target = $region48
      $region47: #{tpu_custom_call.1} parent=5 // pred_region
        %s246 = ssub.s32 %s16, 1
        %s247 = smul.u32 4, %s21
        %p248 = scmp.lt.s32.totalorder %s247, 7
        %s249 = scalar_select %p248, %s247, 7
        %s250 = smul.addr %s249, 4
        %s251 = scalar_lea.vmem %s0, %s250
        %p252 = pneg %p42
        %p253 = pneg %p39
        %p254 = pneg %p63
        %p255 = pneg %p60
        %p256 = pneg %p84
        %p257 = pneg %p81
        %p258 = pneg %p105
        %p259 = pneg %p102
        %p260 = pneg %p126
        %p261 = pneg %p123
        %p262 = pneg %p147
        %p263 = pneg %p144
        %p264 = pneg %p168
        %p265 = pneg %p165
        %p266 = pneg %p194
        %p267 = pneg %p191
        %s268 = sand.u32 %s181, 1
        %s269 = scalar_lea.sflag [#allocation3], %s268
        %s270 = sand.u32 %s181, 1
        %s271 = smul.addr %s270, 32
        %s272 = scalar_lea.vmem [#allocation2], %s271
        %s273 = smul.u32 4, %s21
        %p274 = scmp.lt.s32.totalorder %s273, 7
        %s275 = scalar_select %p274, %s273, 7
        %s276 = smul.addr %s275, 4
        %s277 = scalar_lea.vmem %s0, %s276
        %s278 = smul.u32 4, %s21
        %s279 = smul.u32 4, %s21
        %v281 = vld [vmem:[%s277] sm:$0xf]
        %v282 = vld [vmem:[%s277 + $0x4] sm:$0xf]
        %v283 = vld [vmem:[%s277 + $0x8] sm:$0xf]
        %v284 = vld [vmem:[%s277 + $0xc] sm:$0xf]
        %v285 = vld [vmem:[%s1] sm:$0xf]
        %v286 = vld [vmem:[%s1 + $0x4] sm:$0xf]
        %v287 = vld [vmem:[%s1 + $0x8] sm:$0xf]
        %v288 = vld [vmem:[%s1 + $0xc] sm:$0xf]
        %v289 = vld [vmem:[%s2] sm:$0x1]
        %v291 = vlaneseq
        %v292 = vshrl.u32 %v291, 7
        %v293 = vsub.s32 0, %v292
        %v294 = vrot.slane %v289, %v293
        %v300 = vunpack.c.l.b16 %v281
        %v301 = vunpack.c.l.b16 %v282
        %v302 = vunpack.c.l.b16 %v283
        %v303 = vunpack.c.l.b16 %v284
        %v304 = vpack.c.b16 %v301, %v300
        %v305 = vpack.c.b16 %v303, %v302
        %v310 = vunpack.c.l.b16 %v285
        %v311 = vunpack.c.l.b16 %v286
        %v312 = vunpack.c.l.b16 %v287
        %v313 = vunpack.c.l.b16 %v288
        %v314 = vpack.c.b16 %v311, %v310
        %v315 = vpack.c.b16 %v313, %v312
        %vm318 = vcmask 261120
        %v320 = vsel %vm318, %v304, 0
        %v323 = vsel %vm318, %v305, 0
        %325 = vmatprep.subr.bf16.mxu0 0
        %326 = vmatpush1.bf16.msra.mxu0 %v314
        %327 = vmatprep.subr.bf16.mxu0 0
        %328 = vmatpush1.bf16.msra.mxu0 %v315
        %329 = vmatprep.subr.bf16.mxu0 0
        %330 = vmatpush1.bf16.msra.mxu0 0
        %331 = vmatprep.subr.bf16.mxu0 0
        %332 = vmatpush1.bf16.msra.mxu0 0
        %333 = vmatprep.subr.bf16.mxu0 0
        %334 = vmatpush1.bf16.msra.mxu0 0
        %335 = vmatprep.subr.bf16.mxu0 0
        %336 = vmatpush1.bf16.msra.mxu0 0
        %337 = vmatprep.subr.bf16.mxu0 0
        %338 = vmatpush1.bf16.msra.mxu0 0
        %339 = vmatprep.subr.bf16.mxu0 0
        %340 = vmatpush1.bf16.msra.mxu0 0
        %341 = vmatprep.subr.bf16.mxu0 0
        %342 = vmatpush1.bf16.msra.mxu0 0
        %343 = vmatprep.subr.bf16.mxu0 0
        %344 = vmatpush1.bf16.msra.mxu0 0
        %345 = vmatprep.subr.bf16.mxu0 0
        %346 = vmatpush1.bf16.msra.mxu0 0
        %347 = vmatprep.subr.bf16.mxu0 0
        %348 = vmatpush1.bf16.msra.mxu0 0
        %349 = vmatprep.subr.bf16.mxu0 0
        %350 = vmatpush1.bf16.msra.mxu0 0
        %351 = vmatprep.subr.bf16.mxu0 0
        %352 = vmatpush1.bf16.msra.mxu0 0
        %353 = vmatprep.subr.bf16.mxu0 0
        %354 = vmatpush1.bf16.msra.mxu0 0
        %355 = vmatprep.subr.bf16.mxu0 0
        %356 = vmatpush1.bf16.msra.mxu0 0
        %357 = vmatprep.mubr.bf16.mxu0 0
        %358 = vmatmul.mubr.bf16.gmra.mrb[0].mxu0 %v320
        %v359 = vpop.f32.mrb[0].mxu0
        %v360 = vadd.f32 %v294, %v359
        %v361 = vpop.f32.mrb[0].mxu0
        %v362 = vpop.f32.mrb[0].mxu0
        %v363 = vadd.f32 %v294, %v362
        %v364 = vpop.f32.mrb[0].mxu0
        %365 = vmatprep.mubr.bf16.mxu0 0
        %366 = vmatmul.mubr.bf16.gmra.mrb[0].mxu0 %v323
        %v367 = vpop.f32.mrb[0].mxu0
        %v368 = vadd.f32 %v294, %v367
        %v369 = vpop.f32.mrb[0].mxu0
        %v370 = vpop.f32.mrb[0].mxu0
        %v371 = vadd.f32 %v294, %v370
        %v372 = vpop.f32.mrb[0].mxu0
        %373 = vdwg.mxu0
        %v374 = vmax.f32 %v360, 0.0
        %v375 = vmax.f32 %v363, 0.0
        %v376 = vmax.f32 %v368, 0.0
        %v377 = vmax.f32 %v371, 0.0
        %v378 = vpack.c.bf16 %v375, %v374
        %v379 = vpack.c.bf16 %v377, %v376
        %v380 = vld [vmem:[%s3] sm:$0xf]
        %v381 = vld [vmem:[%s3 + $0x4] sm:$0xf]
        %v382 = vld [vmem:[%s3 + $0x8] sm:$0xf]
        %v383 = vld [vmem:[%s3 + $0xc] sm:$0xf]
        %v384 = vld [vmem:[%s3 + $0x10] sm:$0xf]
        %v385 = vld [vmem:[%s3 + $0x14] sm:$0xf]
        %v386 = vld [vmem:[%s3 + $0x18] sm:$0xf]
        %v387 = vld [vmem:[%s3 + $0x1c] sm:$0xf]
        %v388 = vld [vmem:[%s3 + $0x20] sm:$0xf]
        %v389 = vld [vmem:[%s3 + $0x24] sm:$0xf]
        %v390 = vld [vmem:[%s3 + $0x28] sm:$0xf]
        %v391 = vld [vmem:[%s3 + $0x2c] sm:$0xf]
        %v392 = vld [vmem:[%s3 + $0x30] sm:$0xf]
        %v393 = vld [vmem:[%s3 + $0x34] sm:$0xf]
        %v394 = vld [vmem:[%s3 + $0x38] sm:$0xf]
        %v395 = vld [vmem:[%s3 + $0x3c] sm:$0xf]
        %v396 = vld [vmem:[%s4] sm:$0x1]
        %v398 = vlaneseq
        %v399 = vshrl.u32 %v398, 7
        %v400 = vsub.s32 0, %v399
        %v401 = vrot.slane %v396, %v400
        %v419 = vunpack.c.l.b16 %v380
        %v420 = vunpack.c.l.b16 %v381
        %v421 = vunpack.c.l.b16 %v382
        %v422 = vunpack.c.l.b16 %v383
        %v423 = vunpack.c.l.b16 %v384
        %v424 = vunpack.c.l.b16 %v385
        %v425 = vunpack.c.l.b16 %v386
        %v426 = vunpack.c.l.b16 %v387
        %v427 = vunpack.c.l.b16 %v388
        %v428 = vunpack.c.l.b16 %v389
        %v429 = vunpack.c.l.b16 %v390
        %v430 = vunpack.c.l.b16 %v391
        %v431 = vunpack.c.l.b16 %v392
        %v432 = vunpack.c.l.b16 %v393
        %v433 = vunpack.c.l.b16 %v394
        %v434 = vunpack.c.l.b16 %v395
        %v435 = vpack.c.b16 %v420, %v419
        %v436 = vpack.c.b16 %v422, %v421
        %v437 = vpack.c.b16 %v424, %v423
        %v438 = vpack.c.b16 %v426, %v425
        %v439 = vpack.c.b16 %v428, %v427
        %v440 = vpack.c.b16 %v430, %v429
        %v441 = vpack.c.b16 %v432, %v431
        %v442 = vpack.c.b16 %v434, %v433
        %451 = vmatprep.subr.bf16.mxu0 0
        %452 = vmatpush1.bf16.msra.mxu0 %v435
        %453 = vmatprep.subr.bf16.mxu0 0
        %454 = vmatpush1.bf16.msra.mxu0 %v436
        %455 = vmatprep.subr.bf16.mxu0 0
        %456 = vmatpush1.bf16.msra.mxu0 %v437
        %457 = vmatprep.subr.bf16.mxu0 0
        %458 = vmatpush1.bf16.msra.mxu0 %v438
        %459 = vmatprep.subr.bf16.mxu0 0
        %460 = vmatpush1.bf16.msra.mxu0 %v439
        %461 = vmatprep.subr.bf16.mxu0 0
        %462 = vmatpush1.bf16.msra.mxu0 %v440
        %463 = vmatprep.subr.bf16.mxu0 0
        %464 = vmatpush1.bf16.msra.mxu0 %v441
        %465 = vmatprep.subr.bf16.mxu0 0
        %466 = vmatpush1.bf16.msra.mxu0 %v442
        %467 = vmatprep.subr.bf16.mxu0 0
        %468 = vmatpush1.bf16.msra.mxu0 0
        %469 = vmatprep.subr.bf16.mxu0 0
        %470 = vmatpush1.bf16.msra.mxu0 0
        %471 = vmatprep.subr.bf16.mxu0 0
        %472 = vmatpush1.bf16.msra.mxu0 0
        %473 = vmatprep.subr.bf16.mxu0 0
        %474 = vmatpush1.bf16.msra.mxu0 0
        %475 = vmatprep.subr.bf16.mxu0 0
        %476 = vmatpush1.bf16.msra.mxu0 0
        %477 = vmatprep.subr.bf16.mxu0 0
        %478 = vmatpush1.bf16.msra.mxu0 0
        %479 = vmatprep.subr.bf16.mxu0 0
        %480 = vmatpush1.bf16.msra.mxu0 0
        %481 = vmatprep.subr.bf16.mxu0 0
        %482 = vmatpush1.bf16.msra.mxu0 0
        %483 = vmatprep.mubr.bf16.mxu0 0
        %484 = vmatmul.mubr.bf16.gmra.mrb[0].mxu0 %v378
        %v485 = vpop.f32.mrb[0].mxu0
        %v486 = vadd.f32 %v401, %v485
        %v487 = vpop.f32.mrb[0].mxu0
        %v488 = vpop.f32.mrb[0].mxu0
        %v489 = vadd.f32 %v401, %v488
        %v490 = vpop.f32.mrb[0].mxu0
        %491 = vmatprep.mubr.bf16.mxu0 0
        %492 = vmatmul.mubr.bf16.gmra.mrb[0].mxu0 %v379
        %v493 = vpop.f32.mrb[0].mxu0
        %v494 = vadd.f32 %v401, %v493
        %v495 = vpop.f32.mrb[0].mxu0
        %v496 = vpop.f32.mrb[0].mxu0
        %v497 = vadd.f32 %v401, %v496
        %v498 = vpop.f32.mrb[0].mxu0
        %499 = vdwg.mxu0
        %v500 = vmax.f32 %v486, 0.0
        %v501 = vmax.f32 %v489, 0.0
        %v502 = vmax.f32 %v494, 0.0
        %v503 = vmax.f32 %v497, 0.0
        %v504 = vpack.c.bf16 %v501, %v500
        %v505 = vpack.c.bf16 %v503, %v502
        %v506 = vld [vmem:[%s5] sm:$0xf]
        %v507 = vld [vmem:[%s5 + $0x4] sm:$0xf]
        %v508 = vld [vmem:[%s5 + $0x8] sm:$0xf]
        %v509 = vld [vmem:[%s5 + $0xc] sm:$0xf]
        %v510 = vld [vmem:[%s5 + $0x10] sm:$0xf]
        %v511 = vld [vmem:[%s5 + $0x14] sm:$0xf]
        %v512 = vld [vmem:[%s5 + $0x18] sm:$0xf]
        %v513 = vld [vmem:[%s5 + $0x1c] sm:$0xf]
        %v514 = vld [vmem:[%s6] sm:$0x1]
        %v516 = vlaneseq
        %v517 = vshrl.u32 %v516, 7
        %v518 = vsub.s32 0, %v517
        %v519 = vrot.slane %v514, %v518
        %v529 = vunpack.c.l.b16 %v506
        %v530 = vunpack.c.l.b16 %v507
        %v531 = vunpack.c.l.b16 %v508
        %v532 = vunpack.c.l.b16 %v509
        %v533 = vunpack.c.l.b16 %v510
        %v534 = vunpack.c.l.b16 %v511
        %v535 = vunpack.c.l.b16 %v512
        %v536 = vunpack.c.l.b16 %v513
        %v537 = vpack.c.b16 %v530, %v529
        %v538 = vpack.c.b16 %v532, %v531
        %v539 = vpack.c.b16 %v534, %v533
        %v540 = vpack.c.b16 %v536, %v535
        %vm545 = vcmask 523264
        %v547 = vsel %vm545, %v504, 0
        %v550 = vsel %vm545, %v505, 0
        %552 = vmatprep.subr.bf16.mxu0 0
        %553 = vmatpush1.bf16.msra.mxu0 %v537
        %554 = vmatprep.subr.bf16.mxu0 0
        %555 = vmatpush1.bf16.msra.mxu0 %v538
        %556 = vmatprep.subr.bf16.mxu0 0
        %557 = vmatpush1.bf16.msra.mxu0 %v539
        %558 = vmatprep.subr.bf16.mxu0 0
        %559 = vmatpush1.bf16.msra.mxu0 %v540
        %560 = vmatprep.subr.bf16.mxu0 0
        %561 = vmatpush1.bf16.msra.mxu0 0
        %562 = vmatprep.subr.bf16.mxu0 0
        %563 = vmatpush1.bf16.msra.mxu0 0
        %564 = vmatprep.subr.bf16.mxu0 0
        %565 = vmatpush1.bf16.msra.mxu0 0
        %566 = vmatprep.subr.bf16.mxu0 0
        %567 = vmatpush1.bf16.msra.mxu0 0
        %568 = vmatprep.subr.bf16.mxu0 0
        %569 = vmatpush1.bf16.msra.mxu0 0
        %570 = vmatprep.subr.bf16.mxu0 0
        %571 = vmatpush1.bf16.msra.mxu0 0
        %572 = vmatprep.subr.bf16.mxu0 0
        %573 = vmatpush1.bf16.msra.mxu0 0
        %574 = vmatprep.subr.bf16.mxu0 0
        %575 = vmatpush1.bf16.msra.mxu0 0
        %576 = vmatprep.subr.bf16.mxu0 0
        %577 = vmatpush1.bf16.msra.mxu0 0
        %578 = vmatprep.subr.bf16.mxu0 0
        %579 = vmatpush1.bf16.msra.mxu0 0
        %580 = vmatprep.subr.bf16.mxu0 0
        %581 = vmatpush1.bf16.msra.mxu0 0
        %582 = vmatprep.subr.bf16.mxu0 0
        %583 = vmatpush1.bf16.msra.mxu0 0
        %584 = vmatprep.mubr.bf16.mxu0 0
        %585 = vmatmul.mubr.bf16.gmra.mrb[0].mxu0 %v547
        %v586 = vpop.f32.mrb[0].mxu0
        %v587 = vadd.f32 %v519, %v586
        %v588 = vpop.f32.mrb[0].mxu0
        %v589 = vpop.f32.mrb[0].mxu0
        %v590 = vadd.f32 %v519, %v589
        %v591 = vpop.f32.mrb[0].mxu0
        %592 = vmatprep.mubr.bf16.mxu0 0
        %593 = vmatmul.mubr.bf16.gmra.mrb[0].mxu0 %v550
        %v594 = vpop.f32.mrb[0].mxu0
        %v595 = vadd.f32 %v519, %v594
        %v596 = vpop.f32.mrb[0].mxu0
        %v597 = vpop.f32.mrb[0].mxu0
        %v598 = vadd.f32 %v519, %v597
        %v599 = vpop.f32.mrb[0].mxu0
        %600 = vdwg.mxu0
        %601 = vst [vmem:[%s272] sm:$0xff] %v587
        %602 = vst [vmem:[%s272 + $0x8] sm:$0xff] %v590
        %603 = vst [vmem:[%s272 + $0x10] sm:$0xff] %v595
        %604 = vst [vmem:[%s272 + $0x18] sm:$0xff] %v598
        %s605 = sand.u32 %s181, 1
        %s606 = scalar_lea.sflag [#allocation3], %s605
        %s607 = sand.u32 %s181, 1
        %s608 = smul.addr %s607, 32
        %s609 = scalar_lea.vmem [#allocation2], %s608
        // Predicated region
        $region49: #{tpu_custom_call.1} parent=47 // pred_check
          %p610 = pneg %p191
        $region50: #{tpu_custom_call.1} parent=47 // pred_check_branch
          %612 = sbr.rel (%p610) target = $region52
        $region51: #{tpu_custom_call.1} parent=47 // pred_region
          %s613 = smul.u32 4, %s21
          %s615 = ssub.s32 512, 512
          %616 = vsyncadd %s606, %s615
          %s617 = smul.addr %s613, 128
          %s618 = scalar_lea.hbm %s7, %s617
          %s619 = sshll.u32 %s609, 4
          %s620 = int_to_ptr.vmem [resolvable:$true] %s619
          %625 = dma.vmem_to_hbm [thread:$0]  %s620, 512, %s618, %s606, 128, 128, 8
        $region52: #{tpu_custom_call.1} parent=47 // pred_fallthru
          _
      $region48: #{tpu_custom_call.1} parent=5 // pred_fallthru
        _
      %p626 = scmp.le.s32.totalorder 2, %s16
      // Predicated region
      $region53: #{tpu_custom_call.1} parent=5 // pred_check
        %p627 = pneg %p626
      $region54: #{tpu_custom_call.1} parent=5 // pred_check_branch
        %629 = sbr.rel (%p627) target = $region56
      $region55: #{tpu_custom_call.1} parent=5 // pred_region
        %s630 = ssub.s32 %s16, 2
        // Predicated region
        $region57: #{tpu_custom_call.1} parent=55 // pred_check
          %p631 = pneg %p197
        $region58: #{tpu_custom_call.1} parent=55 // pred_check_branch
          %633 = sbr.rel (%p631) target = $region60
        $region59: #{tpu_custom_call.1} parent=55 // pred_region
          %s634 = sand.u32 %s182, 1
          %s635 = scalar_lea.sflag [#allocation3], %s634
          %s636 = sand.u32 %s182, 1
          %s637 = smul.addr %s636, 32
          %s638 = scalar_lea.vmem [#allocation2], %s637
          %639 = dma.done %s635, 512
        $region60: #{tpu_custom_call.1} parent=55 // pred_fallthru
          _
      $region56: #{tpu_custom_call.1} parent=5 // pred_fallthru
        _
    $region6: #{tpu_custom_call.1} parent=1 // loop_footer
      %s20 = sadd.s32 1, %s16
    $region7: #{tpu_custom_call.1} parent=1 // loop_footer_branch
      %15 = sbr.rel target = $region3
    $region8: #{tpu_custom_call.1} parent=1 // loop_exit
      _
    %640 = vsyncpa [#allocation3], 1
    %s641 = scalar_lea.sflag [#allocation3], 1
    %642 = vsyncpa %s641, 1

</llo_original>
